<compile_context>
chip_gen: v6e
topology: v6e:2x2x1
jax: 0.10.0
libtpu: 0.0.40
codegen_flags: <defaults>
</compile_context>

<pallas_src>
import functools

import jax
import jax.numpy as jnp
import numpy as np
from jax.experimental import pallas as pl
from jax.experimental.pallas import tpu as pltpu


def _basic_block_kernel(x_ref, w1_ref, w2_ref, b1_ref, b2_ref, mask_ref,
                        out_ref, mid_ref, *, H, W, matmul_dtype):
    # Per grid step (a block of B images):
    #   x_ref    : (B, Cin, L)      L = (H+2)*(W+2) + 2, channel-major,
    #                               spatially zero-padded, flattened, lane-dense
    #   w1_ref   : (Cout, 9*Cin)    conv1 weights, tap-major, BN1 scale folded
    #   w2_ref   : (Cout, 9*Cout)   conv2 weights, tap-major, BN2 scale folded
    #   b1_ref   : (Cout, 1)        folded BN1 bias
    #   b2_ref   : (Cout, 1)        folded BN2 bias
    #   mask_ref : (Cout, H*Wp)     1.0 on valid output columns, 0.0 on the two
    #                               junk (padding) columns of each image row
    #   out_ref  : (B, Cout, H*Wp)  lane-dense output (junk columns dropped in
    #                               the wrapper)
    #   mid_ref  : (Cout, L)        VMEM scratch: padded conv1 output
    Wp = W + 2
    HWo = H * Wp                      # output span in padded-width flat layout
    B = x_ref.shape[0]

    w1 = w1_ref[...]
    w2 = w2_ref[...]
    b1 = b1_ref[...]
    b2 = b2_ref[...]
    mask = mask_ref[...]

    # tap (kh, kw) -> contiguous lane offset into the flattened padded image
    offs = tuple(kh * Wp + kw for kh in range(3) for kw in range(3))

    for b in range(B):
        xb = x_ref[b]                                    # (Cin, L) f32

        # ---- conv1 (3x3, s1, p1) + bn1 + relu1: one fused K=9*Cin matmul ---
        rhs1 = jnp.concatenate([xb[:, o:o + HWo] for o in offs], axis=0)
        acc1 = jnp.dot(w1, rhs1.astype(matmul_dtype),
                       preferred_element_type=jnp.float32)   # (Cout, HWo)
        mid = jnp.maximum(acc1 + b1, 0.0) * mask         # zero the pad columns

        # One dense zero store + one lane-dense interior store: mid_ref now
        # holds conv1's output as a correctly zero-padded conv2 input.
        mid_ref[...] = jnp.zeros_like(mid_ref)
        mid_ref[:, Wp + 1:Wp + 1 + HWo] = mid
        m = mid_ref[...]                                 # (Cout, L)

        # ---- conv2 (3x3, s1, p1) + bn2 + residual + relu2 ------------------
        rhs2 = jnp.concatenate([m[:, o:o + HWo] for o in offs], axis=0)
        acc2 = jnp.dot(w2, rhs2.astype(matmul_dtype),
                       preferred_element_type=jnp.float32)   # (Cout, HWo)
        # residual = interior of the padded input (stride=1, Cin == Cout)
        residual = xb[:, Wp + 1:Wp + 1 + HWo]            # (Cin, HWo)
        out_ref[b] = jnp.maximum(acc2 + b2 + residual, 0.0)


def _pick_batch_block(n):
    # Several images per grid step amortize the ~0.35us per-step overhead; keep
    # the grid length >= 2 so a v7x megacore can split the batch across TCs.
    upper = max(1, min(8, n // 2))
    for b in range(upper, 0, -1):
        if n % b == 0:
            return b
    return 1


def basic_block_forward(x_nchw, params, eps=1e-5, matmul_dtype=jnp.float32):
    """BasicBlock forward.  x_nchw: (N, C, H, W) float32, PyTorch layout."""
    N, Cin, H, W = x_nchw.shape
    Hp, Wp = H + 2, W + 2
    HWo = H * Wp                       # per-image output columns (incl. 2 junk)
    L = Hp * Wp + 2                    # flattened padded length (+2 so the last
                                       # tap slice stays in bounds)

    w1 = params["conv1_w"]             # (Cout, Cin, 3, 3) OIHW
    w2 = params["conv2_w"]
    Cout = w1.shape[0]
    assert Cin == Cout, "default BasicBlock (no downsample) needs inplanes == planes"

    # --- BN (inference) folding: scale into weights, bias passed separately --
    s1 = params["bn1_gamma"] / jnp.sqrt(params["bn1_var"] + eps)
    b1 = params["bn1_beta"] - params["bn1_mean"] * s1
    s2 = params["bn2_gamma"] / jnp.sqrt(params["bn2_var"] + eps)
    b2 = params["bn2_beta"] - params["bn2_mean"] * s2

    # OIHW -> (O, KH, KW, I) -> (O, 9*I); row order matches the im2col RHS
    # (tap-major, channel-minor).
    w1f = (jnp.transpose(w1, (0, 2, 3, 1)) * s1[:, None, None, None]
           ).reshape(Cout, 9 * Cin).astype(matmul_dtype)
    w2f = (jnp.transpose(w2, (0, 2, 3, 1)) * s2[:, None, None, None]
           ).reshape(Cout, 9 * Cout).astype(matmul_dtype)
    b1f = b1.reshape(Cout, 1).astype(jnp.float32)
    b2f = b2.reshape(Cout, 1).astype(jnp.float32)

    # Channel-major, spatially zero-padded, flattened input (no NHWC transpose)
    xpad = jnp.pad(x_nchw.astype(jnp.float32), ((0, 0), (0, 0), (1, 1), (1, 1)))
    xflat = jnp.pad(xpad.reshape(N, Cin, Hp * Wp), ((0, 0), (0, 0), (0, 2)))

    # Mask that zeroes the 2 junk (padding) columns of each image row in the
    # (H, Wp)-flattened output layout.
    col = jnp.arange(HWo, dtype=jnp.int32) % Wp
    mask = jnp.broadcast_to((col < W).astype(jnp.float32)[None, :], (Cout, HWo))

    B_blk = _pick_batch_block(N)
    grid = (N // B_blk,)

    kern = functools.partial(_basic_block_kernel, H=H, W=W,
                             matmul_dtype=matmul_dtype)

    out = pl.pallas_call(
        kern,
        out_shape=jax.ShapeDtypeStruct((N, Cout, HWo), jnp.float32),
        grid=grid,
        in_specs=[
            pl.BlockSpec((B_blk, Cin, L), lambda n: (n, 0, 0)),
            pl.BlockSpec((Cout, 9 * Cin), lambda n: (0, 0)),
            pl.BlockSpec((Cout, 9 * Cout), lambda n: (0, 0)),
            pl.BlockSpec((Cout, 1), lambda n: (0, 0)),
            pl.BlockSpec((Cout, 1), lambda n: (0, 0)),
            pl.BlockSpec((Cout, HWo), lambda n: (0, 0)),
        ],
        out_specs=pl.BlockSpec((B_blk, Cout, HWo), lambda n: (n, 0, 0)),
        scratch_shapes=[pltpu.VMEM((Cout, L), jnp.float32)],
        compiler_params=pltpu.CompilerParams(
            dimension_semantics=("parallel",)),
    )(xflat, w1f, w2f, b1f, b2f, mask)

    # (N, Cout, H*Wp) -> (N, Cout, H, Wp) -> drop the 2 junk padding columns.
    return out.reshape(N, Cout, H, Wp)[:, :, :, :W]


def _reference(x_nchw, params, eps=1e-5):
    """Pure-JAX reference matching the PyTorch forward (inference-mode BN)."""
    def conv(x, w):
        return jax.lax.conv_general_dilated(
            x, w, window_strides=(1, 1), padding=((1, 1), (1, 1)),
            dimension_numbers=("NCHW", "OIHW", "NCHW"))

    def bn(x, g, b, m, v):
        g, b, m, v = (t[None, :, None, None] for t in (g, b, m, v))
        return (x - m) / jnp.sqrt(v + eps) * g + b

    out = conv(x_nchw, params["conv1_w"])
    out = jax.nn.relu(bn(out, params["bn1_gamma"], params["bn1_beta"],
                         params["bn1_mean"], params["bn1_var"]))
    out = conv(out, params["conv2_w"])
    out = bn(out, params["bn2_gamma"], params["bn2_beta"],
             params["bn2_mean"], params["bn2_var"])
    return jax.nn.relu(out + x_nchw)


if __name__ == "__main__":
    key = jax.random.PRNGKey(0)
    N, C, H, W = 2, 4, 16, 16            # inplanes = planes = 4, stride = 1
    ks = jax.random.split(key, 12)

    x = jax.random.normal(ks[0], (N, C, H, W), jnp.float32)
    params = dict(
        conv1_w=0.1 * jax.random.normal(ks[1], (C, C, 3, 3), jnp.float32),
        conv2_w=0.1 * jax.random.normal(ks[2], (C, C, 3, 3), jnp.float32),
        bn1_gamma=jax.random.uniform(ks[3], (C,), jnp.float32, 0.5, 1.5),
        bn1_beta=0.1 * jax.random.normal(ks[4], (C,), jnp.float32),
        bn1_mean=0.1 * jax.random.normal(ks[5], (C,), jnp.float32),
        bn1_var=jax.random.uniform(ks[6], (C,), jnp.float32, 0.5, 1.5),
        bn2_gamma=jax.random.uniform(ks[7], (C,), jnp.float32, 0.5, 1.5),
        bn2_beta=0.1 * jax.random.normal(ks[8], (C,), jnp.float32),
        bn2_mean=0.1 * jax.random.normal(ks[9], (C,), jnp.float32),
        bn2_var=jax.random.uniform(ks[10], (C,), jnp.float32, 0.5, 1.5),
    )

    out = jax.jit(basic_block_forward)(x, params)
    out = jax.block_until_ready(out)

    ref = _reference(x, params)
    assert out.shape == (N, C, H, W)
    np.testing.assert_allclose(np.asarray(out), np.asarray(ref),
                               rtol=1e-4, atol=1e-4)
    print("KERNEL_OK")
</pallas_src>

<mosaic_0001>
module attributes {stable_mosaic.version = 11 : i64} {
  func.func @_basic_block_kernel(%arg0: i32, %arg1: memref<1x4x326xf32, #tpu.memory_space<vmem>>, %arg2: memref<4x36xf32, #tpu.memory_space<vmem>>, %arg3: memref<4x36xf32, #tpu.memory_space<vmem>>, %arg4: memref<4x1xf32, #tpu.memory_space<vmem>>, %arg5: memref<4x1xf32, #tpu.memory_space<vmem>>, %arg6: memref<4x288xf32, #tpu.memory_space<vmem>>, %arg7: memref<1x4x288xf32, #tpu.memory_space<vmem>>, %arg8: memref<4x326xf32, #tpu.memory_space<vmem>>) attributes {dimension_semantics = [#tpu.dimension_semantics<parallel>], iteration_bounds = array<i64: 2>, scalar_prefetch = 0 : i64, scratch_operands = 1 : i64, tpu.core_type = #tpu.core_type<tc>, window_params = [{transform_indices = @transform_0, window_bounds = array<i64: 1, 4, 326>}, {pipeline_mode = #tpu.pipeline_mode<synchronous>, transform_indices = @transform_1, window_bounds = array<i64: 4, 36>}, {pipeline_mode = #tpu.pipeline_mode<synchronous>, transform_indices = @transform_2, window_bounds = array<i64: 4, 36>}, {pipeline_mode = #tpu.pipeline_mode<synchronous>, transform_indices = @transform_3, window_bounds = array<i64: 4, 1>}, {pipeline_mode = #tpu.pipeline_mode<synchronous>, transform_indices = @transform_4, window_bounds = array<i64: 4, 1>}, {pipeline_mode = #tpu.pipeline_mode<synchronous>, transform_indices = @transform_5, window_bounds = array<i64: 4, 288>}, {transform_indices = @transform_6, window_bounds = array<i64: 1, 4, 288>}]} {
    %c0 = arith.constant 0 : index
    %c0_0 = arith.constant 0 : index
    %0 = vector.load %arg2[%c0, %c0_0] : memref<4x36xf32, #tpu.memory_space<vmem>>, vector<4x36xf32>
    %c0_1 = arith.constant 0 : index
    %c0_2 = arith.constant 0 : index
    %1 = vector.load %arg3[%c0_1, %c0_2] : memref<4x36xf32, #tpu.memory_space<vmem>>, vector<4x36xf32>
    %c0_3 = arith.constant 0 : index
    %c0_4 = arith.constant 0 : index
    %2 = vector.load %arg4[%c0_3, %c0_4] : memref<4x1xf32, #tpu.memory_space<vmem>>, vector<4x1xf32>
    %c0_5 = arith.constant 0 : index
    %c0_6 = arith.constant 0 : index
    %3 = vector.load %arg5[%c0_5, %c0_6] : memref<4x1xf32, #tpu.memory_space<vmem>>, vector<4x1xf32>
    %c0_7 = arith.constant 0 : index
    %c0_8 = arith.constant 0 : index
    %4 = vector.load %arg6[%c0_7, %c0_8] : memref<4x288xf32, #tpu.memory_space<vmem>>, vector<4x288xf32>
    %c0_9 = arith.constant 0 : index
    %c0_10 = arith.constant 0 : index
    %c0_11 = arith.constant 0 : index
    %5 = vector.load %arg1[%c0_9, %c0_10, %c0_11] : memref<1x4x326xf32, #tpu.memory_space<vmem>>, vector<1x4x326xf32>
    %6 = vector.shape_cast %5 : vector<1x4x326xf32> to vector<4x326xf32>
    %7 = vector.extract_strided_slice %6 {offsets = [0, 0], sizes = [4, 288], strides = [1, 1]} : vector<4x326xf32> to vector<4x288xf32>
    %8 = vector.extract_strided_slice %6 {offsets = [0, 1], sizes = [4, 288], strides = [1, 1]} : vector<4x326xf32> to vector<4x288xf32>
    %9 = vector.extract_strided_slice %6 {offsets = [0, 2], sizes = [4, 288], strides = [1, 1]} : vector<4x326xf32> to vector<4x288xf32>
    %10 = vector.extract_strided_slice %6 {offsets = [0, 18], sizes = [4, 288], strides = [1, 1]} : vector<4x326xf32> to vector<4x288xf32>
    %11 = vector.extract_strided_slice %6 {offsets = [0, 19], sizes = [4, 288], strides = [1, 1]} : vector<4x326xf32> to vector<4x288xf32>
    %12 = vector.extract_strided_slice %6 {offsets = [0, 20], sizes = [4, 288], strides = [1, 1]} : vector<4x326xf32> to vector<4x288xf32>
    %13 = vector.extract_strided_slice %6 {offsets = [0, 36], sizes = [4, 288], strides = [1, 1]} : vector<4x326xf32> to vector<4x288xf32>
    %14 = vector.extract_strided_slice %6 {offsets = [0, 37], sizes = [4, 288], strides = [1, 1]} : vector<4x326xf32> to vector<4x288xf32>
    %15 = vector.extract_strided_slice %6 {offsets = [0, 38], sizes = [4, 288], strides = [1, 1]} : vector<4x326xf32> to vector<4x288xf32>
    %16 = tpu.concatenate %7, %8, %9, %10, %11, %12, %13, %14, %15 in 0 : vector<4x288xf32>, vector<4x288xf32>, vector<4x288xf32>, vector<4x288xf32>, vector<4x288xf32>, vector<4x288xf32>, vector<4x288xf32>, vector<4x288xf32>, vector<4x288xf32> -> vector<36x288xf32>
    %cst = arith.constant dense<0.000000e+00> : vector<4x288xf32>
    %17 = tpu.matmul %0, %16, %cst {dimension_numbers = #tpu.dot_dimension_numbers<[1], [0], [0], [1], [0, 0, 1, 1], [], []>} : vector<4x36xf32>, vector<36x288xf32>, vector<4x288xf32> -> vector<4x288xf32>
    %18 = vector.broadcast %2 : vector<4x1xf32> to vector<4x288xf32>
    %19 = arith.addf %17, %18 : vector<4x288xf32>
    %cst_12 = arith.constant 0.000000e+00 : f32
    %20 = vector.broadcast %cst_12 : f32 to vector<4x288xf32>
    %21 = arith.maximumf %19, %20 : vector<4x288xf32>
    %22 = arith.mulf %21, %4 : vector<4x288xf32>
    %cst_13 = arith.constant 0.000000e+00 : f32
    %23 = vector.broadcast %cst_13 : f32 to vector<4x326xf32>
    %c0_14 = arith.constant 0 : index
    %c0_15 = arith.constant 0 : index
    %24 = vector.load %arg8[%c0_14, %c0_15] : memref<4x326xf32, #tpu.memory_space<vmem>>, vector<4x326xf32>
    tpu.vector_store %arg8[%c0_14, %c0_15], %23 {strides = array<i32>} : memref<4x326xf32, #tpu.memory_space<vmem>>, vector<4x326xf32>,
    %c0_16 = arith.constant 0 : index
    %c19 = arith.constant 19 : index
    %25 = vector.load %arg8[%c0_16, %c19] : memref<4x326xf32, #tpu.memory_space<vmem>>, vector<4x288xf32>
    tpu.vector_store %arg8[%c0_16, %c19], %22 {strides = array<i32>} : memref<4x326xf32, #tpu.memory_space<vmem>>, vector<4x288xf32>,
    %c0_17 = arith.constant 0 : index
    %c0_18 = arith.constant 0 : index
    %26 = vector.load %arg8[%c0_17, %c0_18] : memref<4x326xf32, #tpu.memory_space<vmem>>, vector<4x326xf32>
    %27 = vector.extract_strided_slice %26 {offsets = [0, 0], sizes = [4, 288], strides = [1, 1]} : vector<4x326xf32> to vector<4x288xf32>
    %28 = vector.extract_strided_slice %26 {offsets = [0, 1], sizes = [4, 288], strides = [1, 1]} : vector<4x326xf32> to vector<4x288xf32>
    %29 = vector.extract_strided_slice %26 {offsets = [0, 2], sizes = [4, 288], strides = [1, 1]} : vector<4x326xf32> to vector<4x288xf32>
    %30 = vector.extract_strided_slice %26 {offsets = [0, 18], sizes = [4, 288], strides = [1, 1]} : vector<4x326xf32> to vector<4x288xf32>
    %31 = vector.extract_strided_slice %26 {offsets = [0, 19], sizes = [4, 288], strides = [1, 1]} : vector<4x326xf32> to vector<4x288xf32>
    %32 = vector.extract_strided_slice %26 {offsets = [0, 20], sizes = [4, 288], strides = [1, 1]} : vector<4x326xf32> to vector<4x288xf32>
    %33 = vector.extract_strided_slice %26 {offsets = [0, 36], sizes = [4, 288], strides = [1, 1]} : vector<4x326xf32> to vector<4x288xf32>
    %34 = vector.extract_strided_slice %26 {offsets = [0, 37], sizes = [4, 288], strides = [1, 1]} : vector<4x326xf32> to vector<4x288xf32>
    %35 = vector.extract_strided_slice %26 {offsets = [0, 38], sizes = [4, 288], strides = [1, 1]} : vector<4x326xf32> to vector<4x288xf32>
    %36 = tpu.concatenate %27, %28, %29, %30, %31, %32, %33, %34, %35 in 0 : vector<4x288xf32>, vector<4x288xf32>, vector<4x288xf32>, vector<4x288xf32>, vector<4x288xf32>, vector<4x288xf32>, vector<4x288xf32>, vector<4x288xf32>, vector<4x288xf32> -> vector<36x288xf32>
    %cst_19 = arith.constant dense<0.000000e+00> : vector<4x288xf32>
    %37 = tpu.matmul %1, %36, %cst_19 {dimension_numbers = #tpu.dot_dimension_numbers<[1], [0], [0], [1], [0, 0, 1, 1], [], []>} : vector<4x36xf32>, vector<36x288xf32>, vector<4x288xf32> -> vector<4x288xf32>
    %38 = vector.extract_strided_slice %6 {offsets = [0, 19], sizes = [4, 288], strides = [1, 1]} : vector<4x326xf32> to vector<4x288xf32>
    %39 = vector.broadcast %3 : vector<4x1xf32> to vector<4x288xf32>
    %40 = arith.addf %37, %39 : vector<4x288xf32>
    %41 = arith.addf %40, %38 : vector<4x288xf32>
    %cst_20 = arith.constant 0.000000e+00 : f32
    %42 = vector.broadcast %cst_20 : f32 to vector<4x288xf32>
    %43 = arith.maximumf %41, %42 : vector<4x288xf32>
    %c0_21 = arith.constant 0 : index
    %c0_22 = arith.constant 0 : index
    %c0_23 = arith.constant 0 : index
    %44 = vector.load %arg7[%c0_21, %c0_22, %c0_23] : memref<1x4x288xf32, #tpu.memory_space<vmem>>, vector<1x4x288xf32>
    %45 = vector.shape_cast %44 : vector<1x4x288xf32> to vector<4x288xf32>
    %46 = vector.shape_cast %43 : vector<4x288xf32> to vector<1x4x288xf32>
    tpu.vector_store %arg7[%c0_21, %c0_22, %c0_23], %46 {strides = array<i32>} : memref<1x4x288xf32, #tpu.memory_space<vmem>>, vector<1x4x288xf32>,
    return
  }
  func.func @transform_0(%arg0: i32) -> (i32, i32, i32) {
    %c0_i32 = arith.constant 0 : i32
    %c0_i32_0 = arith.constant 0 : i32
    %c0_i32_1 = arith.constant 0 : i32
    return %arg0, %c0_i32, %c0_i32_0 : i32, i32, i32
  }
  func.func @transform_1(%arg0: i32) -> (i32, i32) {
    %c0_i32 = arith.constant 0 : i32
    %c0_i32_0 = arith.constant 0 : i32
    %c0_i32_1 = arith.constant 0 : i32
    return %c0_i32, %c0_i32_0 : i32, i32
  }
  func.func @transform_2(%arg0: i32) -> (i32, i32) {
    %c0_i32 = arith.constant 0 : i32
    %c0_i32_0 = arith.constant 0 : i32
    %c0_i32_1 = arith.constant 0 : i32
    return %c0_i32, %c0_i32_0 : i32, i32
  }
  func.func @transform_3(%arg0: i32) -> (i32, i32) {
    %c0_i32 = arith.constant 0 : i32
    %c0_i32_0 = arith.constant 0 : i32
    %c0_i32_1 = arith.constant 0 : i32
    return %c0_i32, %c0_i32_0 : i32, i32
  }
  func.func @transform_4(%arg0: i32) -> (i32, i32) {
    %c0_i32 = arith.constant 0 : i32
    %c0_i32_0 = arith.constant 0 : i32
    %c0_i32_1 = arith.constant 0 : i32
    return %c0_i32, %c0_i32_0 : i32, i32
  }
  func.func @transform_5(%arg0: i32) -> (i32, i32) {
    %c0_i32 = arith.constant 0 : i32
    %c0_i32_0 = arith.constant 0 : i32
    %c0_i32_1 = arith.constant 0 : i32
    return %c0_i32, %c0_i32_0 : i32, i32
  }
  func.func @transform_6(%arg0: i32) -> (i32, i32, i32) {
    %c0_i32 = arith.constant 0 : i32
    %c0_i32_0 = arith.constant 0 : i32
    %c0_i32_1 = arith.constant 0 : i32
    return %arg0, %c0_i32, %c0_i32_0 : i32, i32, i32
  }
}

</mosaic_0001>

<llo_original>
// kernel: basic_block_forward.1
$region0: #{basic_block_forward.1}
  #allocation0 [shape = 'u32[]', space=smem, size = 0x4, offset = 0x4, fixed_abs, tag = 'smem constant byte address 0x4 - core index']
  #allocation1 [shape = 'u32[144,128]{1,0:T(1,128)}', space=vmem, size = 0x12000, scoped, tag = 'internal scratch']
  #allocation2 [shape = 'f32[4,326]{1,0:T(4,128)}', space=vmem, size = 0x1800, scoped, tag = 'scratch operand']
  %s0 = inlined_call_operand.vmem [shape: f32[2,4,326], index: 0, kind: input, shape index: {}]
  %s1 = inlined_call_operand.vmem [shape: f32[4,36], index: 1, kind: input, shape index: {}]
  %s2 = inlined_call_operand.vmem [shape: f32[4,36], index: 2, kind: input, shape index: {}]
  %s3 = inlined_call_operand.vmem [shape: f32[4,1], index: 3, kind: input, shape index: {}]
  %s4 = inlined_call_operand.vmem [shape: f32[4,1], index: 4, kind: input, shape index: {}]
  %s5 = inlined_call_operand.vmem [shape: f32[4,288], index: 5, kind: input, shape index: {}]
  %s6 = inlined_call_operand.vmem [shape: f32[2,4,288], index: 6, kind: output, shape index: {}]
  %s7 = sld [smem:[#allocation0]]
  $region57: #{basic_block_forward.1} parent=0
    _
  %s9 = ssub.s32 1, %s7
  %s10 = scalar_select 0, %s9, %s7
  loop: start=0, step=1, limit=4
  $region2: #{basic_block_forward.1} parent=0 // loop_pre_header
    _
  $region3: #{basic_block_forward.1} parent=0 // loop_header
    %s12 = sphi 0, %s16
    %p13 = scmp.ge.s32.totalorder %s12, 4
    %s22 = sphi 0, %s24
    %s25 = sphi 0, %s22
    %s26 = sphi 0, %s25
    %s42 = sphi 0, %s26
    %s46 = sphi 0, %s46
    %s48 = sphi 0, %s46
    %s49 = sphi 0, %s48
    %s63 = sphi 0, %s49
    %s67 = sphi 0, %s67
    %s69 = sphi 0, %s67
    %s70 = sphi 0, %s69
    %s84 = sphi 0, %s70
    %s88 = sphi 0, %s88
    %s90 = sphi 0, %s88
    %s91 = sphi 0, %s90
    %s105 = sphi 0, %s91
    %s109 = sphi 0, %s109
    %s111 = sphi 0, %s109
    %s112 = sphi 0, %s111
    %s126 = sphi 0, %s112
    %s130 = sphi 0, %s130
    %s132 = sphi 0, %s130
    %s133 = sphi 0, %s132
    %s147 = sphi 0, %s133
    %s153 = sphi 0, %s155
    %s156 = sphi 0, %s153
    %s157 = sphi 0, %s156
    %s173 = sphi 0, %s157
  $region4: #{basic_block_forward.1} parent=0 // loop_header_branch
    %15 = sbr.rel (%p13) target = $region8
  $region5: #{basic_block_forward.1} parent=0 // loop_body
    %s17 = ssub.s32 %s12, 1
    %s18 = ssub.s32 %s12, 2
    %s19 = sadd.s32 %s12, 1
    %s20 = ssub.s32 %s12, %s19
    %p21 = scmp.eq.s32.totalorder %s20, 0
    %s23 = sadd.s32 %s22, 1
    %s24 = scalar_select %p21, %s22, %s23
    %p27 = pneg %p21
    %p28 = scmp.eq.s32.totalorder %s12, 1
    %p29 = por %p27, %p28
    %p30 = scmp.ne.s32.totalorder %s22, %s25
    %p31 = scmp.eq.s32.totalorder %s12, 0
    %p32 = por %p30, %p31
    %p33 = scmp.ne.s32.totalorder %s22, %s25
    %p34 = scmp.eq.s32.totalorder %s17, 1
    %p35 = por %p33, %p34
    %p36 = scmp.ne.s32.totalorder %s25, %s26
    %p37 = scmp.eq.s32.totalorder %s17, 0
    %p38 = por %p36, %p37
    %p39 = scmp.ne.s32.totalorder %s25, %s26
    %p40 = scmp.eq.s32.totalorder %s18, 1
    %p41 = por %p39, %p40
    %p43 = scmp.ne.s32.totalorder %s26, %s42
    %p44 = scmp.eq.s32.totalorder %s18, 0
    %p45 = por %p43, %p44
    %s47 = sadd.s32 %s46, 1
    %p50 = scmp.eq.s32.totalorder %s12, 1
    %p51 = scmp.ne.s32.totalorder %s46, %s48
    %p52 = scmp.eq.s32.totalorder %s12, 0
    %p53 = por %p51, %p52
    %p54 = scmp.ne.s32.totalorder %s46, %s48
    %p55 = scmp.eq.s32.totalorder %s17, 1
    %p56 = por %p54, %p55
    %p57 = scmp.ne.s32.totalorder %s48, %s49
    %p58 = scmp.eq.s32.totalorder %s17, 0
    %p59 = por %p57, %p58
    %p60 = scmp.ne.s32.totalorder %s48, %s49
    %p61 = scmp.eq.s32.totalorder %s18, 1
    %p62 = por %p60, %p61
    %p64 = scmp.ne.s32.totalorder %s49, %s63
    %p65 = scmp.eq.s32.totalorder %s18, 0
    %p66 = por %p64, %p65
    %s68 = sadd.s32 %s67, 1
    %p71 = scmp.eq.s32.totalorder %s12, 1
    %p72 = scmp.ne.s32.totalorder %s67, %s69
    %p73 = scmp.eq.s32.totalorder %s12, 0
    %p74 = por %p72, %p73
    %p75 = scmp.ne.s32.totalorder %s67, %s69
    %p76 = scmp.eq.s32.totalorder %s17, 1
    %p77 = por %p75, %p76
    %p78 = scmp.ne.s32.totalorder %s69, %s70
    %p79 = scmp.eq.s32.totalorder %s17, 0
    %p80 = por %p78, %p79
    %p81 = scmp.ne.s32.totalorder %s69, %s70
    %p82 = scmp.eq.s32.totalorder %s18, 1
    %p83 = por %p81, %p82
    %p85 = scmp.ne.s32.totalorder %s70, %s84
    %p86 = scmp.eq.s32.totalorder %s18, 0
    %p87 = por %p85, %p86
    %s89 = sadd.s32 %s88, 1
    %p92 = scmp.eq.s32.totalorder %s12, 1
    %p93 = scmp.ne.s32.totalorder %s88, %s90
    %p94 = scmp.eq.s32.totalorder %s12, 0
    %p95 = por %p93, %p94
    %p96 = scmp.ne.s32.totalorder %s88, %s90
    %p97 = scmp.eq.s32.totalorder %s17, 1
    %p98 = por %p96, %p97
    %p99 = scmp.ne.s32.totalorder %s90, %s91
    %p100 = scmp.eq.s32.totalorder %s17, 0
    %p101 = por %p99, %p100
    %p102 = scmp.ne.s32.totalorder %s90, %s91
    %p103 = scmp.eq.s32.totalorder %s18, 1
    %p104 = por %p102, %p103
    %p106 = scmp.ne.s32.totalorder %s91, %s105
    %p107 = scmp.eq.s32.totalorder %s18, 0
    %p108 = por %p106, %p107
    %s110 = sadd.s32 %s109, 1
    %p113 = scmp.eq.s32.totalorder %s12, 1
    %p114 = scmp.ne.s32.totalorder %s109, %s111
    %p115 = scmp.eq.s32.totalorder %s12, 0
    %p116 = por %p114, %p115
    %p117 = scmp.ne.s32.totalorder %s109, %s111
    %p118 = scmp.eq.s32.totalorder %s17, 1
    %p119 = por %p117, %p118
    %p120 = scmp.ne.s32.totalorder %s111, %s112
    %p121 = scmp.eq.s32.totalorder %s17, 0
    %p122 = por %p120, %p121
    %p123 = scmp.ne.s32.totalorder %s111, %s112
    %p124 = scmp.eq.s32.totalorder %s18, 1
    %p125 = por %p123, %p124
    %p127 = scmp.ne.s32.totalorder %s112, %s126
    %p128 = scmp.eq.s32.totalorder %s18, 0
    %p129 = por %p127, %p128
    %s131 = sadd.s32 %s130, 1
    %p134 = scmp.eq.s32.totalorder %s12, 1
    %p135 = scmp.ne.s32.totalorder %s130, %s132
    %p136 = scmp.eq.s32.totalorder %s12, 0
    %p137 = por %p135, %p136
    %p138 = scmp.ne.s32.totalorder %s130, %s132
    %p139 = scmp.eq.s32.totalorder %s17, 1
    %p140 = por %p138, %p139
    %p141 = scmp.ne.s32.totalorder %s132, %s133
    %p142 = scmp.eq.s32.totalorder %s17, 0
    %p143 = por %p141, %p142
    %p144 = scmp.ne.s32.totalorder %s132, %s133
    %p145 = scmp.eq.s32.totalorder %s18, 1
    %p146 = por %p144, %p145
    %p148 = scmp.ne.s32.totalorder %s133, %s147
    %p149 = scmp.eq.s32.totalorder %s18, 0
    %p150 = por %p148, %p149
    %s151 = ssub.s32 %s12, %s19
    %p152 = scmp.eq.s32.totalorder %s151, 0
    %s154 = sadd.s32 %s153, 1
    %s155 = scalar_select %p152, %s153, %s154
    %p158 = pneg %p152
    %p159 = scmp.eq.s32.totalorder %s12, 1
    %p160 = por %p158, %p159
    %p161 = scmp.ne.s32.totalorder %s153, %s156
    %p162 = scmp.eq.s32.totalorder %s12, 0
    %p163 = por %p161, %p162
    %p164 = scmp.ne.s32.totalorder %s153, %s156
    %p165 = scmp.eq.s32.totalorder %s17, 1
    %p166 = por %p164, %p165
    %p167 = scmp.ne.s32.totalorder %s156, %s157
    %p168 = scmp.eq.s32.totalorder %s17, 0
    %p169 = por %p167, %p168
    %p170 = scmp.ne.s32.totalorder %s156, %s157
    %p171 = scmp.eq.s32.totalorder %s18, 1
    %p172 = por %p170, %p171
    %p174 = scmp.ne.s32.totalorder %s157, %s173
    %p175 = scmp.eq.s32.totalorder %s18, 0
    %p176 = por %p174, %p175
    %p177 = scmp.le.s32.totalorder 1, %s12
    %p178 = scmp.lt.s32.totalorder %s12, 3
    %p179 = pnand %p177, %p178
    %p180 = pneg %p179
    // Predicated region
    $region9: #{basic_block_forward.1} parent=5 // pred_check
      _
    $region10: #{basic_block_forward.1} parent=5 // pred_check_branch
      %182 = sbr.rel (%p179) target = $region12
    $region11: #{basic_block_forward.1} parent=5 // pred_region
      %s183 = ssub.s32 %s12, 1
      // Predicated region
      $region13: #{basic_block_forward.1} parent=11 // pred_check
        %p184 = pneg %p59
      $region14: #{basic_block_forward.1} parent=11 // pred_check_branch
        %186 = sbr.rel (%p184) target = $region16
      $region15: #{basic_block_forward.1} parent=11 // pred_region
        _
      $region16: #{basic_block_forward.1} parent=11 // pred_fallthru
        _
      // Predicated region
      $region17: #{basic_block_forward.1} parent=11 // pred_check
        %p187 = pneg %p80
      $region18: #{basic_block_forward.1} parent=11 // pred_check_branch
        %189 = sbr.rel (%p187) target = $region20
      $region19: #{basic_block_forward.1} parent=11 // pred_region
        _
      $region20: #{basic_block_forward.1} parent=11 // pred_fallthru
        _
      // Predicated region
      $region21: #{basic_block_forward.1} parent=11 // pred_check
        %p190 = pneg %p101
      $region22: #{basic_block_forward.1} parent=11 // pred_check_branch
        %192 = sbr.rel (%p190) target = $region24
      $region23: #{basic_block_forward.1} parent=11 // pred_region
        _
      $region24: #{basic_block_forward.1} parent=11 // pred_fallthru
        _
      // Predicated region
      $region25: #{basic_block_forward.1} parent=11 // pred_check
        %p193 = pneg %p122
      $region26: #{basic_block_forward.1} parent=11 // pred_check_branch
        %195 = sbr.rel (%p193) target = $region28
      $region27: #{basic_block_forward.1} parent=11 // pred_region
        _
      $region28: #{basic_block_forward.1} parent=11 // pred_fallthru
        _
      // Predicated region
      $region29: #{basic_block_forward.1} parent=11 // pred_check
        %p196 = pneg %p143
      $region30: #{basic_block_forward.1} parent=11 // pred_check_branch
        %198 = sbr.rel (%p196) target = $region32
      $region31: #{basic_block_forward.1} parent=11 // pred_region
        _
      $region32: #{basic_block_forward.1} parent=11 // pred_fallthru
        _
    $region12: #{basic_block_forward.1} parent=5 // pred_fallthru
      _
    %p199 = scmp.lt.s32.totalorder %s12, 2
    // Predicated region
    $region33: #{basic_block_forward.1} parent=5 // pred_check
      %p200 = pneg %p199
    $region34: #{basic_block_forward.1} parent=5 // pred_check_branch
      %202 = sbr.rel (%p200) target = $region36
    $region35: #{basic_block_forward.1} parent=5 // pred_region
      // Predicated region
      $region37: #{basic_block_forward.1} parent=35 // pred_check
        %p203 = pneg %p32
      $region38: #{basic_block_forward.1} parent=35 // pred_check_branch
        %205 = sbr.rel (%p203) target = $region40
      $region39: #{basic_block_forward.1} parent=35 // pred_region
        %p206 = scmp.lt.s32.totalorder %s12, 1
        %s207 = scalar_select %p206, %s12, 1
        %s208 = smul.addr %s207, 3
        %s209 = smul.addr %s208, 4
        %s210 = scalar_lea.vmem %s0, %s209
      $region40: #{basic_block_forward.1} parent=35 // pred_fallthru
        _
    $region36: #{basic_block_forward.1} parent=5 // pred_fallthru
      _
    %p211 = scmp.le.s32.totalorder 1, %s12
    %p212 = scmp.lt.s32.totalorder %s12, 3
    %p213 = pnand %p211, %p212
    %p214 = pneg %p213
    // Predicated region
    $region41: #{basic_block_forward.1} parent=5 // pred_check
      _
    $region42: #{basic_block_forward.1} parent=5 // pred_check_branch
      %216 = sbr.rel (%p213) target = $region44
    $region43: #{basic_block_forward.1} parent=5 // pred_region
      %s217 = ssub.s32 %s12, 1
      %p218 = scmp.lt.s32.totalorder %s17, 1
      %s219 = scalar_select %p218, %s17, 1
      %s220 = smul.addr %s219, 3
      %s221 = smul.addr %s220, 4
      %s222 = scalar_lea.vmem %s0, %s221
      %p223 = pneg %p38
      %p224 = pneg %p35
      %p225 = pneg %p59
      %p226 = pneg %p56
      %p227 = pneg %p80
      %p228 = pneg %p77
      %p229 = pneg %p101
      %p230 = pneg %p98
      %p231 = pneg %p122
      %p232 = pneg %p119
      %p233 = pneg %p143
      %p234 = pneg %p140
      %p235 = pneg %p169
      %p236 = pneg %p166
      %p237 = scmp.lt.s32.totalorder %s17, 1
      %s238 = scalar_select %p237, %s17, 1
      %s239 = smul.addr %s238, 3
      %s240 = smul.addr %s239, 4
      %s241 = scalar_lea.vmem %s6, %s240
      %p242 = scmp.lt.s32.totalorder %s17, 1
      %s243 = scalar_select %p242, %s17, 1
      %s244 = smul.addr %s243, 3
      %s245 = smul.addr %s244, 4
      %s246 = scalar_lea.vmem %s0, %s245
      %p247 = scmp.lt.s32.totalorder %s17, 1
      %s248 = scalar_select %p247, %s17, 1
      %s249 = smul.addr %s248, 3
      %s250 = smul.addr %s249, 4
      %s251 = scalar_lea.vmem %s6, %s250
      %v252 = vld [vmem:[%s1] sm:$0xf]
      %v253 = vld [vmem:[%s2] sm:$0xf]
      %v254 = vld [vmem:[%s3] sm:$0xf]
      %v255 = vld [vmem:[%s4] sm:$0xf]
      %v256 = vld [vmem:[%s5] sm:$0xff]
      %v257 = vld [vmem:[%s5 + $0x8] sm:$0xf]
      %v258 = vld [vmem:[%s246] sm:$0xff]
      %v259 = vld [vmem:[%s246 + $0x8] sm:$0xf]
      %v262 = vcombine.high %v258, %v258
      %v264 = vcombine.low %v258, %v258
      %v265 = vcombine.low %v259, %v259
      %266 = vrot.lane.b32.xlu0 %v264, 127
      %v267 = vpop.permute.xlu0 %266
      %268 = vrot.lane.b32.xlu0 %v258, 127
      %v269 = vpop.permute.xlu0 %268
      %270 = vrot.lane.b32.xlu0 %v265, 127
      %v271 = vpop.permute.xlu0 %270
      %vm272 = vcmask 1039360
      %v273 = vsel %vm272, %v267, %v269
      %v274 = vsel %vm272, %v269, %v271
      %278 = vrot.lane.b32.xlu0 %v258, 126
      %v279 = vpop.permute.xlu0 %278
      %280 = vrot.lane.b32.xlu0 %v262, 126
      %v281 = vpop.permute.xlu0 %280
      %282 = vrot.lane.b32.xlu0 %v259, 126
      %v283 = vpop.permute.xlu0 %282
      %vm284 = vcmask 1031168
      %v285 = vsel %vm284, %v279, %v281
      %v286 = vsel %vm284, %v281, %v283
      %290 = vrot.lane.b32.xlu0 %v264, 110
      %v291 = vpop.permute.xlu0 %290
      %292 = vrot.lane.b32.xlu0 %v258, 110
      %v293 = vpop.permute.xlu0 %292
      %294 = vrot.lane.b32.xlu0 %v265, 110
      %v295 = vpop.permute.xlu0 %294
      %vm296 = vcmask 900096
      %v297 = vsel %vm296, %v291, %v293
      %v298 = vsel %vm296, %v293, %v295
      %302 = vrot.lane.b32.xlu0 %v258, 109
      %v303 = vpop.permute.xlu0 %302
      %304 = vrot.lane.b32.xlu0 %v262, 109
      %v305 = vpop.permute.xlu0 %304
      %306 = vrot.lane.b32.xlu0 %v259, 109
      %v307 = vpop.permute.xlu0 %306
      %vm308 = vcmask 891904
      %v309 = vsel %vm308, %v303, %v305
      %v310 = vsel %vm308, %v305, %v307
      %314 = vrot.lane.b32.xlu0 %v264, 108
      %v315 = vpop.permute.xlu0 %314
      %316 = vrot.lane.b32.xlu0 %v258, 108
      %v317 = vpop.permute.xlu0 %316
      %318 = vrot.lane.b32.xlu0 %v265, 108
      %v319 = vpop.permute.xlu0 %318
      %vm320 = vcmask 883712
      %v321 = vsel %vm320, %v315, %v317
      %v322 = vsel %vm320, %v317, %v319
      %326 = vrot.lane.b32.xlu0 %v258, 92
      %v327 = vpop.permute.xlu0 %326
      %328 = vrot.lane.b32.xlu0 %v262, 92
      %v329 = vpop.permute.xlu0 %328
      %330 = vrot.lane.b32.xlu0 %v259, 92
      %v331 = vpop.permute.xlu0 %330
      %vm332 = vcmask 752640
      %v333 = vsel %vm332, %v327, %v329
      %v334 = vsel %vm332, %v329, %v331
      %338 = vrot.lane.b32.xlu0 %v264, 91
      %v339 = vpop.permute.xlu0 %338
      %340 = vrot.lane.b32.xlu0 %v258, 91
      %v341 = vpop.permute.xlu0 %340
      %342 = vrot.lane.b32.xlu0 %v265, 91
      %v343 = vpop.permute.xlu0 %342
      %vm344 = vcmask 744448
      %v345 = vsel %vm344, %v339, %v341
      %v346 = vsel %vm344, %v341, %v343
      %350 = vrot.lane.b32.xlu0 %v258, 90
      %v351 = vpop.permute.xlu0 %350
      %352 = vrot.lane.b32.xlu0 %v262, 90
      %v353 = vpop.permute.xlu0 %352
      %354 = vrot.lane.b32.xlu0 %v259, 90
      %v355 = vpop.permute.xlu0 %354
      %vm356 = vcmask 736256
      %v357 = vsel %vm356, %v351, %v353
      %v358 = vsel %vm356, %v353, %v355
      %vm359 = vcmask 1043456
      %v360 = vsel %vm359, %v258, %v273
      %v361 = vsel %vm359, %v262, %v274
      %v362 = vsel %vm359, %v259, %v271
      %v363 = vsel %vm359, %v285, %v297
      %v364 = vsel %vm359, %v286, %v298
      %v365 = vsel %vm359, %v283, %v295
      %v366 = vsel %vm359, %v309, %v321
      %v367 = vsel %vm359, %v310, %v322
      %v368 = vsel %vm359, %v307, %v319
      %v369 = vsel %vm359, %v333, %v345
      %v370 = vsel %vm359, %v334, %v346
      %v371 = vsel %vm359, %v331, %v343
      %373 = vset.pattern.permute.xlu0 0
      %374 = vperm.xlu0 %373, %v254
      %v375 = vpop.permute.xlu0 %374
      %vm377 = vcmask 293888
      %v379 = vsel %vm377, %v252, 0
      %v381 = vsel %vm359, %v357, 0
      %v383 = vsel %vm359, %v358, 0
      %v385 = vsel %vm359, %v355, 0
      %387 = vmatprep.subr.mxu0 0.0
      %388 = vmatpush1.msra.mxu0 0.0
      %389 = vmatprep.subr.mxu0 0.0
      %390 = vmatpush1.msra.mxu0 0.0
      %391 = vmatprep.subr.mxu0 0.0
      %392 = vmatpush1.msra.mxu0 0.0
      %393 = vmatprep.subr.mxu0 0.0
      %394 = vmatpush1.msra.mxu0 0.0
      %395 = vmatprep.subr.mxu0 0.0
      %396 = vmatpush1.msra.mxu0 0.0
      %397 = vmatprep.subr.mxu0 0.0
      %398 = vmatpush1.msra.mxu0 0.0
      %399 = vmatprep.subr.mxu0 0.0
      %400 = vmatpush1.msra.mxu0 0.0
      %401 = vmatprep.subr.mxu0 0.0
      %402 = vmatpush1.msra.mxu0 0.0
      %403 = vmatprep.subr.mxu0 0.0
      %404 = vmatpush1.msra.mxu0 0.0
      %405 = vmatprep.subr.mxu0 0.0
      %406 = vmatpush1.msra.mxu0 0.0
      %407 = vmatprep.subr.mxu0 0.0
      %408 = vmatpush1.msra.mxu0 0.0
      %409 = vmatprep.subr.mxu0 %v383
      %410 = vmatpush1.msra.mxu0 %v381
      %411 = vmatprep.subr.mxu0 %v370
      %412 = vmatpush1.msra.mxu0 %v369
      %413 = vmatprep.subr.mxu0 %v367
      %414 = vmatpush1.msra.mxu0 %v366
      %415 = vmatprep.subr.mxu0 %v364
      %416 = vmatpush1.msra.mxu0 %v363
      %417 = vmatprep.subr.mxu0 %v361
      %418 = vmatpush1.msra.mxu0 %v360
      %419 = vmatprep.subr.mxu0 0.0
      %420 = vmatpush2.msra.mxu0 0.0
      %421 = vmatprep.subr.mxu0 0.0
      %422 = vmatpush2.msra.mxu0 0.0
      %423 = vmatprep.subr.mxu0 0.0
      %424 = vmatpush2.msra.mxu0 0.0
      %425 = vmatprep.subr.mxu0 0.0
      %426 = vmatpush2.msra.mxu0 0.0
      %427 = vmatprep.subr.mxu0 0.0
      %428 = vmatpush2.msra.mxu0 0.0
      %429 = vmatprep.subr.mxu0 0.0
      %430 = vmatpush2.msra.mxu0 0.0
      %431 = vmatprep.subr.mxu0 0.0
      %432 = vmatpush2.msra.mxu0 0.0
      %433 = vmatprep.subr.mxu0 0.0
      %434 = vmatpush2.msra.mxu0 0.0
      %435 = vmatprep.subr.mxu0 0.0
      %436 = vmatpush2.msra.mxu0 0.0
      %437 = vmatprep.subr.mxu0 0.0
      %438 = vmatpush2.msra.mxu0 0.0
      %439 = vmatprep.subr.mxu0 0.0
      %440 = vmatpush2.msra.mxu0 0.0
      %441 = vmatprep.subr.mxu0 0.0
      %442 = vmatpush2.msra.mxu0 0.0
      %443 = vmatprep.subr.mxu0 0.0
      %444 = vmatpush2.msra.mxu0 0.0
      %445 = vmatprep.subr.mxu0 0.0
      %446 = vmatpush2.msra.mxu0 0.0
      %447 = vmatprep.subr.mxu0 0.0
      %448 = vmatpush2.msra.mxu0 0.0
      %449 = vmatprep.subr.mxu0 0.0
      %450 = vmatpush2.msra.mxu0 0.0
      %451 = vmatprep.mubr.f32.mxu0 0.0
      %452 = vmatmul.mubr.f32.gmra.mxu0 %v379
      %v453 = vpop.f32.mrf.mxu0
      %v454 = vadd.f32 %v375, %v453
      %v455 = vpop.f32.mrf.mxu0
      %v456 = vadd.f32 %v375, %v455
      %457 = vdwg.mxu0
      %458 = vmatprep.subr.mxu0 0.0
      %459 = vmatpush1.msra.mxu0 0.0
      %460 = vmatprep.subr.mxu0 0.0
      %461 = vmatpush1.msra.mxu0 0.0
      %462 = vmatprep.subr.mxu0 0.0
      %463 = vmatpush1.msra.mxu0 0.0
      %464 = vmatprep.subr.mxu0 0.0
      %465 = vmatpush1.msra.mxu0 0.0
      %466 = vmatprep.subr.mxu0 0.0
      %467 = vmatpush1.msra.mxu0 0.0
      %468 = vmatprep.subr.mxu0 0.0
      %469 = vmatpush1.msra.mxu0 0.0
      %470 = vmatprep.subr.mxu0 0.0
      %471 = vmatpush1.msra.mxu0 0.0
      %472 = vmatprep.subr.mxu0 0.0
      %473 = vmatpush1.msra.mxu0 0.0
      %474 = vmatprep.subr.mxu0 0.0
      %475 = vmatpush1.msra.mxu0 0.0
      %476 = vmatprep.subr.mxu0 0.0
      %477 = vmatpush1.msra.mxu0 0.0
      %478 = vmatprep.subr.mxu0 0.0
      %479 = vmatpush1.msra.mxu0 0.0
      %480 = vmatprep.subr.mxu0 0.0
      %481 = vmatpush1.msra.mxu0 %v385
      %482 = vmatprep.subr.mxu0 0.0
      %483 = vmatpush1.msra.mxu0 %v371
      %484 = vmatprep.subr.mxu0 0.0
      %485 = vmatpush1.msra.mxu0 %v368
      %486 = vmatprep.subr.mxu0 0.0
      %487 = vmatpush1.msra.mxu0 %v365
      %488 = vmatprep.subr.mxu0 0.0
      %489 = vmatpush1.msra.mxu0 %v362
      %490 = vmatprep.subr.mxu0 0.0
      %491 = vmatpush2.msra.mxu0 0.0
      %492 = vmatprep.subr.mxu0 0.0
      %493 = vmatpush2.msra.mxu0 0.0
      %494 = vmatprep.subr.mxu0 0.0
      %495 = vmatpush2.msra.mxu0 0.0
      %496 = vmatprep.subr.mxu0 0.0
      %497 = vmatpush2.msra.mxu0 0.0
      %498 = vmatprep.subr.mxu0 0.0
      %499 = vmatpush2.msra.mxu0 0.0
      %500 = vmatprep.subr.mxu0 0.0
      %501 = vmatpush2.msra.mxu0 0.0
      %502 = vmatprep.subr.mxu0 0.0
      %503 = vmatpush2.msra.mxu0 0.0
      %504 = vmatprep.subr.mxu0 0.0
      %505 = vmatpush2.msra.mxu0 0.0
      %506 = vmatprep.subr.mxu0 0.0
      %507 = vmatpush2.msra.mxu0 0.0
      %508 = vmatprep.subr.mxu0 0.0
      %509 = vmatpush2.msra.mxu0 0.0
      %510 = vmatprep.subr.mxu0 0.0
      %511 = vmatpush2.msra.mxu0 0.0
      %512 = vmatprep.subr.mxu0 0.0
      %513 = vmatpush2.msra.mxu0 0.0
      %514 = vmatprep.subr.mxu0 0.0
      %515 = vmatpush2.msra.mxu0 0.0
      %516 = vmatprep.subr.mxu0 0.0
      %517 = vmatpush2.msra.mxu0 0.0
      %518 = vmatprep.subr.mxu0 0.0
      %519 = vmatpush2.msra.mxu0 0.0
      %520 = vmatprep.subr.mxu0 0.0
      %521 = vmatpush2.msra.mxu0 0.0
      %522 = vmatprep.mubr.f32.mxu0 0.0
      %523 = vmatmul.mubr.f32.gmra.mxu0 %v379
      %v524 = vpop.f32.mrf.mxu0
      %v525 = vadd.f32 %v375, %v524
      %v526 = vpop.f32.mrf.mxu0
      %527 = vdwg.mxu0
      %v528 = vmax.f32 %v454, 0.0
      %v529 = vmax.f32 %v456, 0.0
      %v530 = vmax.f32 %v525, 0.0
      %v532 = vcombine.high %v256, %v256
      %v534 = vmul.f32 %v528, %v256
      %v535 = vmul.f32 %v529, %v532
      %v536 = vmul.f32 %v530, %v257
      %537 = vst [vmem:[#allocation2] sm:$0xff] 0.0
      %vm538 = vcmask 568320
      %539 = vst.msk [vmem:[#allocation2 + $0x8] sm:$0xf] %vm538, 0.0
      %v543 = vcombine.low %v534, %v535
      %544 = vrot.lane.b32.xlu0 %v543, 19
      %v545 = vpop.permute.xlu0 %544
      %546 = vrot.lane.b32.xlu0 %v536, 19
      %v547 = vpop.permute.xlu0 %546
      %v548 = vrot.slane %v545, 4
      %vm549 = vcmask 154624
      %v550 = vsel %vm549, %v548, %v545
      %v551 = vsel %vm549, %v548, %v547
      %vm554 = vcmask 1043608
      %vm555 = vcmask 1047556
      %vm556 = vmor %vm555, %vm554
      %557 = vst.msk [vmem:[#allocation2] sm:$0xff] %vm556, %v550
      %vm558 = vcmask 412672
      %559 = vst.msk [vmem:[#allocation2 + $0x8] sm:$0xf] %vm558, %v551
      %v560 = vld [vmem:[#allocation2] sm:$0xff]
      %v561 = vld [vmem:[#allocation2 + $0x8] sm:$0xf]
      %v564 = vcombine.high %v560, %v560
      %v566 = vcombine.low %v560, %v560
      %v567 = vcombine.low %v561, %v561
      %568 = vrot.lane.b32.xlu0 %v566, 127
      %v569 = vpop.permute.xlu0 %568
      %570 = vrot.lane.b32.xlu0 %v560, 127
      %v571 = vpop.permute.xlu0 %570
      %572 = vrot.lane.b32.xlu0 %v567, 127
      %v573 = vpop.permute.xlu0 %572
      %v574 = vsel %vm272, %v569, %v571
      %v575 = vsel %vm272, %v571, %v573
      %579 = vrot.lane.b32.xlu0 %v560, 126
      %v580 = vpop.permute.xlu0 %579
      %581 = vrot.lane.b32.xlu0 %v564, 126
      %v582 = vpop.permute.xlu0 %581
      %583 = vrot.lane.b32.xlu0 %v561, 126
      %v584 = vpop.permute.xlu0 %583
      %v585 = vsel %vm284, %v580, %v582
      %v586 = vsel %vm284, %v582, %v584
      %590 = vrot.lane.b32.xlu0 %v566, 110
      %v591 = vpop.permute.xlu0 %590
      %592 = vrot.lane.b32.xlu0 %v560, 110
      %v593 = vpop.permute.xlu0 %592
      %594 = vrot.lane.b32.xlu0 %v567, 110
      %v595 = vpop.permute.xlu0 %594
      %v596 = vsel %vm296, %v591, %v593
      %v597 = vsel %vm296, %v593, %v595
      %601 = vrot.lane.b32.xlu0 %v560, 109
      %v602 = vpop.permute.xlu0 %601
      %603 = vrot.lane.b32.xlu0 %v564, 109
      %v604 = vpop.permute.xlu0 %603
      %605 = vrot.lane.b32.xlu0 %v561, 109
      %v606 = vpop.permute.xlu0 %605
      %v607 = vsel %vm308, %v602, %v604
      %v608 = vsel %vm308, %v604, %v606
      %612 = vrot.lane.b32.xlu0 %v566, 108
      %v613 = vpop.permute.xlu0 %612
      %614 = vrot.lane.b32.xlu0 %v560, 108
      %v615 = vpop.permute.xlu0 %614
      %616 = vrot.lane.b32.xlu0 %v567, 108
      %v617 = vpop.permute.xlu0 %616
      %v618 = vsel %vm320, %v613, %v615
      %v619 = vsel %vm320, %v615, %v617
      %623 = vrot.lane.b32.xlu0 %v560, 92
      %v624 = vpop.permute.xlu0 %623
      %625 = vrot.lane.b32.xlu0 %v564, 92
      %v626 = vpop.permute.xlu0 %625
      %627 = vrot.lane.b32.xlu0 %v561, 92
      %v628 = vpop.permute.xlu0 %627
      %v629 = vsel %vm332, %v624, %v626
      %v630 = vsel %vm332, %v626, %v628
      %634 = vrot.lane.b32.xlu0 %v566, 91
      %v635 = vpop.permute.xlu0 %634
      %636 = vrot.lane.b32.xlu0 %v560, 91
      %v637 = vpop.permute.xlu0 %636
      %638 = vrot.lane.b32.xlu0 %v567, 91
      %v639 = vpop.permute.xlu0 %638
      %v640 = vsel %vm344, %v635, %v637
      %v641 = vsel %vm344, %v637, %v639
      %645 = vrot.lane.b32.xlu0 %v560, 90
      %v646 = vpop.permute.xlu0 %645
      %647 = vrot.lane.b32.xlu0 %v564, 90
      %v648 = vpop.permute.xlu0 %647
      %649 = vrot.lane.b32.xlu0 %v561, 90
      %v650 = vpop.permute.xlu0 %649
      %v651 = vsel %vm356, %v646, %v648
      %v652 = vsel %vm356, %v648, %v650
      %v653 = vsel %vm359, %v560, %v574
      %v654 = vsel %vm359, %v564, %v575
      %v655 = vsel %vm359, %v561, %v573
      %v656 = vsel %vm359, %v585, %v596
      %v657 = vsel %vm359, %v586, %v597
      %v658 = vsel %vm359, %v584, %v595
      %v659 = vsel %vm359, %v607, %v618
      %v660 = vsel %vm359, %v608, %v619
      %v661 = vsel %vm359, %v606, %v617
      %v662 = vsel %vm359, %v629, %v640
      %v663 = vsel %vm359, %v630, %v641
      %v664 = vsel %vm359, %v628, %v639
      %666 = vset.pattern.permute.xlu0 0
      %667 = vperm.xlu0 %666, %v255
      %v668 = vpop.permute.xlu0 %667
      %v671 = vsel %vm377, %v253, 0
      %v673 = vsel %vm359, %v651, 0
      %v675 = vsel %vm359, %v652, 0
      %v677 = vsel %vm359, %v650, 0
      %679 = vmatprep.subr.mxu0 0.0
      %680 = vmatpush1.msra.mxu0 0.0
      %681 = vmatprep.subr.mxu0 0.0
      %682 = vmatpush1.msra.mxu0 0.0
      %683 = vmatprep.subr.mxu0 0.0
      %684 = vmatpush1.msra.mxu0 0.0
      %685 = vmatprep.subr.mxu0 0.0
      %686 = vmatpush1.msra.mxu0 0.0
      %687 = vmatprep.subr.mxu0 0.0
      %688 = vmatpush1.msra.mxu0 0.0
      %689 = vmatprep.subr.mxu0 0.0
      %690 = vmatpush1.msra.mxu0 0.0
      %691 = vmatprep.subr.mxu0 0.0
      %692 = vmatpush1.msra.mxu0 0.0
      %693 = vmatprep.subr.mxu0 0.0
      %694 = vmatpush1.msra.mxu0 0.0
      %695 = vmatprep.subr.mxu0 0.0
      %696 = vmatpush1.msra.mxu0 0.0
      %697 = vmatprep.subr.mxu0 0.0
      %698 = vmatpush1.msra.mxu0 0.0
      %699 = vmatprep.subr.mxu0 0.0
      %700 = vmatpush1.msra.mxu0 0.0
      %701 = vmatprep.subr.mxu0 %v675
      %702 = vmatpush1.msra.mxu0 %v673
      %703 = vmatprep.subr.mxu0 %v663
      %704 = vmatpush1.msra.mxu0 %v662
      %705 = vmatprep.subr.mxu0 %v660
      %706 = vmatpush1.msra.mxu0 %v659
      %707 = vmatprep.subr.mxu0 %v657
      %708 = vmatpush1.msra.mxu0 %v656
      %709 = vmatprep.subr.mxu0 %v654
      %710 = vmatpush1.msra.mxu0 %v653
      %711 = vmatprep.subr.mxu0 0.0
      %712 = vmatpush2.msra.mxu0 0.0
      %713 = vmatprep.subr.mxu0 0.0
      %714 = vmatpush2.msra.mxu0 0.0
      %715 = vmatprep.subr.mxu0 0.0
      %716 = vmatpush2.msra.mxu0 0.0
      %717 = vmatprep.subr.mxu0 0.0
      %718 = vmatpush2.msra.mxu0 0.0
      %719 = vmatprep.subr.mxu0 0.0
      %720 = vmatpush2.msra.mxu0 0.0
      %721 = vmatprep.subr.mxu0 0.0
      %722 = vmatpush2.msra.mxu0 0.0
      %723 = vmatprep.subr.mxu0 0.0
      %724 = vmatpush2.msra.mxu0 0.0
      %725 = vmatprep.subr.mxu0 0.0
      %726 = vmatpush2.msra.mxu0 0.0
      %727 = vmatprep.subr.mxu0 0.0
      %728 = vmatpush2.msra.mxu0 0.0
      %729 = vmatprep.subr.mxu0 0.0
      %730 = vmatpush2.msra.mxu0 0.0
      %731 = vmatprep.subr.mxu0 0.0
      %732 = vmatpush2.msra.mxu0 0.0
      %733 = vmatprep.subr.mxu0 0.0
      %734 = vmatpush2.msra.mxu0 0.0
      %735 = vmatprep.subr.mxu0 0.0
      %736 = vmatpush2.msra.mxu0 0.0
      %737 = vmatprep.subr.mxu0 0.0
      %738 = vmatpush2.msra.mxu0 0.0
      %739 = vmatprep.subr.mxu0 0.0
      %740 = vmatpush2.msra.mxu0 0.0
      %741 = vmatprep.subr.mxu0 0.0
      %742 = vmatpush2.msra.mxu0 0.0
      %743 = vmatprep.mubr.f32.mxu0 0.0
      %744 = vmatmul.mubr.f32.gmra.mxu0 %v671
      %v745 = vpop.f32.mrf.mxu0
      %v746 = vadd.f32 %v668, %v745
      %v747 = vpop.f32.mrf.mxu0
      %v748 = vadd.f32 %v668, %v747
      %749 = vdwg.mxu0
      %750 = vmatprep.subr.mxu0 0.0
      %751 = vmatpush1.msra.mxu0 0.0
      %752 = vmatprep.subr.mxu0 0.0
      %753 = vmatpush1.msra.mxu0 0.0
      %754 = vmatprep.subr.mxu0 0.0
      %755 = vmatpush1.msra.mxu0 0.0
      %756 = vmatprep.subr.mxu0 0.0
      %757 = vmatpush1.msra.mxu0 0.0
      %758 = vmatprep.subr.mxu0 0.0
      %759 = vmatpush1.msra.mxu0 0.0
      %760 = vmatprep.subr.mxu0 0.0
      %761 = vmatpush1.msra.mxu0 0.0
      %762 = vmatprep.subr.mxu0 0.0
      %763 = vmatpush1.msra.mxu0 0.0
      %764 = vmatprep.subr.mxu0 0.0
      %765 = vmatpush1.msra.mxu0 0.0
      %766 = vmatprep.subr.mxu0 0.0
      %767 = vmatpush1.msra.mxu0 0.0
      %768 = vmatprep.subr.mxu0 0.0
      %769 = vmatpush1.msra.mxu0 0.0
      %770 = vmatprep.subr.mxu0 0.0
      %771 = vmatpush1.msra.mxu0 0.0
      %772 = vmatprep.subr.mxu0 0.0
      %773 = vmatpush1.msra.mxu0 %v677
      %774 = vmatprep.subr.mxu0 0.0
      %775 = vmatpush1.msra.mxu0 %v664
      %776 = vmatprep.subr.mxu0 0.0
      %777 = vmatpush1.msra.mxu0 %v661
      %778 = vmatprep.subr.mxu0 0.0
      %779 = vmatpush1.msra.mxu0 %v658
      %780 = vmatprep.subr.mxu0 0.0
      %781 = vmatpush1.msra.mxu0 %v655
      %782 = vmatprep.subr.mxu0 0.0
      %783 = vmatpush2.msra.mxu0 0.0
      %784 = vmatprep.subr.mxu0 0.0
      %785 = vmatpush2.msra.mxu0 0.0
      %786 = vmatprep.subr.mxu0 0.0
      %787 = vmatpush2.msra.mxu0 0.0
      %788 = vmatprep.subr.mxu0 0.0
      %789 = vmatpush2.msra.mxu0 0.0
      %790 = vmatprep.subr.mxu0 0.0
      %791 = vmatpush2.msra.mxu0 0.0
      %792 = vmatprep.subr.mxu0 0.0
      %793 = vmatpush2.msra.mxu0 0.0
      %794 = vmatprep.subr.mxu0 0.0
      %795 = vmatpush2.msra.mxu0 0.0
      %796 = vmatprep.subr.mxu0 0.0
      %797 = vmatpush2.msra.mxu0 0.0
      %798 = vmatprep.subr.mxu0 0.0
      %799 = vmatpush2.msra.mxu0 0.0
      %800 = vmatprep.subr.mxu0 0.0
      %801 = vmatpush2.msra.mxu0 0.0
      %802 = vmatprep.subr.mxu0 0.0
      %803 = vmatpush2.msra.mxu0 0.0
      %804 = vmatprep.subr.mxu0 0.0
      %805 = vmatpush2.msra.mxu0 0.0
      %806 = vmatprep.subr.mxu0 0.0
      %807 = vmatpush2.msra.mxu0 0.0
      %808 = vmatprep.subr.mxu0 0.0
      %809 = vmatpush2.msra.mxu0 0.0
      %810 = vmatprep.subr.mxu0 0.0
      %811 = vmatpush2.msra.mxu0 0.0
      %812 = vmatprep.subr.mxu0 0.0
      %813 = vmatpush2.msra.mxu0 0.0
      %814 = vmatprep.mubr.f32.mxu0 0.0
      %815 = vmatmul.mubr.f32.gmra.mxu0 %v671
      %v816 = vpop.f32.mrf.mxu0
      %v817 = vadd.f32 %v668, %v816
      %v818 = vpop.f32.mrf.mxu0
      %819 = vdwg.mxu0
      %v820 = vadd.f32 %v746, %v309
      %v821 = vadd.f32 %v748, %v310
      %v822 = vadd.f32 %v817, %v307
      %v823 = vmax.f32 %v820, 0.0
      %v824 = vmax.f32 %v821, 0.0
      %v825 = vmax.f32 %v822, 0.0
      %v828 = vcombine.low %v823, %v824
      %830 = vst [vmem:[%s251] sm:$0xff] %v828
      %vm831 = vcmask 257024
      %832 = vst.msk [vmem:[%s251 + $0x8] sm:$0xf] %vm831, %v825
      %p833 = scmp.lt.s32.totalorder %s17, 1
      %s834 = scalar_select %p833, %s17, 1
      %s835 = smul.addr %s834, 3
      %s836 = smul.addr %s835, 4
      %s837 = scalar_lea.vmem %s6, %s836
      // Predicated region
      $region45: #{basic_block_forward.1} parent=43 // pred_check
        %p838 = pneg %p166
      $region46: #{basic_block_forward.1} parent=43 // pred_check_branch
        %840 = sbr.rel (%p838) target = $region48
      $region47: #{basic_block_forward.1} parent=43 // pred_region
        _
      $region48: #{basic_block_forward.1} parent=43 // pred_fallthru
        _
    $region44: #{basic_block_forward.1} parent=5 // pred_fallthru
      _
    %p841 = scmp.le.s32.totalorder 2, %s12
    // Predicated region
    $region49: #{basic_block_forward.1} parent=5 // pred_check
      %p842 = pneg %p841
    $region50: #{basic_block_forward.1} parent=5 // pred_check_branch
      %844 = sbr.rel (%p842) target = $region52
    $region51: #{basic_block_forward.1} parent=5 // pred_region
      %s845 = ssub.s32 %s12, 2
      // Predicated region
      $region53: #{basic_block_forward.1} parent=51 // pred_check
        %p846 = pneg %p172
      $region54: #{basic_block_forward.1} parent=51 // pred_check_branch
        %848 = sbr.rel (%p846) target = $region56
      $region55: #{basic_block_forward.1} parent=51 // pred_region
        %p849 = scmp.lt.s32.totalorder %s18, 1
        %s850 = scalar_select %p849, %s18, 1
        %s851 = smul.addr %s850, 3
        %s852 = smul.addr %s851, 4
        %s853 = scalar_lea.vmem %s6, %s852
      $region56: #{basic_block_forward.1} parent=51 // pred_fallthru
        _
    $region52: #{basic_block_forward.1} parent=5 // pred_fallthru
      _
  $region6: #{basic_block_forward.1} parent=0 // loop_footer
    %s16 = sadd.s32 1, %s12
  $region7: #{basic_block_forward.1} parent=0 // loop_footer_branch
    %11 = sbr.rel target = $region3
  $region8: #{basic_block_forward.1} parent=0 // loop_exit
    _

</llo_original>
